<compile_context>
chip_gen: v7x
topology: tpu7x:2x2x1
jax: 0.10.0
libtpu: 0.0.40
codegen_flags: <defaults>
</compile_context>

<pallas_src>
import functools

import jax
import jax.numpy as jnp
from jax.experimental import pallas as pl
from jax.experimental.pallas import tpu as pltpu


def _eig_loss_kernel(f1_ref, f2_ref, out_ref, *, eig: bool):
    # Block shapes: f1_ref/f2_ref are (Bt, N, M); out_ref is (1, 8, 128).
    f1 = f1_ref[...].astype(jnp.float32)
    f2 = f2_ref[...].astype(jnp.float32)
    _, N, M = f1.shape

    # ---- softmax statistics over axis=1 -------------------------------------
    m1 = jnp.max(f1, axis=1, keepdims=True)           # (Bt, 1, M)
    m2 = jnp.max(f2, axis=1, keepdims=True)
    e1 = jnp.exp(f1 - m1)
    e2 = jnp.exp(f2 - m2)
    s1 = jnp.sum(e1, axis=1, keepdims=True)           # (Bt, 1, M)
    s2 = jnp.sum(e2, axis=1, keepdims=True)
    inv_s2 = pl.reciprocal(s2, approx=False)          # exact; divide -> recip*mul

    # ---- fused KL partial sum (no lsm1/lsm2, no softmax(f1) materialized) ----
    #   lsm2 - lsm1 = (f2 - f1) + (m1 - m2) + (log s1 - log s2)
    log_corr = (m1 - m2) + (jnp.log(s1) - jnp.log(s2))          # (Bt, 1, M)
    kl_sum = jnp.sum((e2 * inv_s2) * ((f2 - f1) + log_corr))

    tr_sum = jnp.float32(0.0)
    if eig:
        # diag mask over the last two dims (handles N != M like torch.diagonal)
        row = jax.lax.broadcasted_iota(jnp.int32, (N, M), 0)
        col = jax.lax.broadcasted_iota(jnp.int32, (N, M), 1)
        diag_mask = (row == col).astype(jnp.float32)[None, :, :]   # (1, N, M)

        inv_s1 = pl.reciprocal(s1, approx=False)
        # d[b, 0, j] = e[b, j, j]  (0 past the diagonal)
        d1 = jnp.sum(e1 * diag_mask, axis=1, keepdims=True)        # (Bt, 1, M)
        d2 = jnp.sum(e2 * diag_mask, axis=1, keepdims=True)
        # per-batch trace difference, then |.| and sum over the tile's batches
        tr_diff = jnp.sum(d1 * inv_s1 - d2 * inv_s2, axis=(1, 2))  # (Bt,)
        tr_sum = jnp.sum(jnp.abs(tr_diff))

    # ---- write per-tile partials into one lane-aligned (8,128) vreg ---------
    r = jax.lax.broadcasted_iota(jnp.int32, (1, 8, 128), 1)
    c = jax.lax.broadcasted_iota(jnp.int32, (1, 8, 128), 2)
    vals = jnp.where(jnp.logical_and(r == 0, c == 0), kl_sum, jnp.float32(0.0))
    if eig:
        vals = jnp.where(jnp.logical_and(r == 0, c == 1), tr_sum, vals)
    out_ref[...] = vals


def _vmem_capacity_bytes() -> int:
    """Physical VMEM of the current TPU generation (conservative fallback)."""
    try:
        info = pltpu.get_tpu_info()
        for attr in ("vmem_capacity_bytes", "vmem_bytes", "vmem_size_bytes"):
            v = getattr(info, attr, None)
            if v:
                return int(v)
    except Exception:
        pass
    return 64 * 1024 * 1024          # v7x-sized fallback: safe on every gen


def _choose_block_b(B: int, N: int, M: int, in_itemsize: int,
                    vmem_limit_bytes: int) -> int:
    """Largest batch tile that fits the VMEM budget and a ~4 MiB DMA target."""
    slab_in = N * M * in_itemsize            # one batch slab, input dtype
    slab_f32 = N * M * 4                     # one batch slab of f32 temps
    # per-batch VMEM cost: 2 inputs x 2 pipeline buffers + ~6 full-size f32 temps
    per_b = 4 * slab_in + 6 * slab_f32
    budget = (3 * vmem_limit_bytes) // 4     # leave compiler headroom
    cap = max(1, budget // per_b)
    # HBM-bound: ~1-4 MiB input tiles already reach ~85% of the HBM roofline
    cap = min(cap, max(1, (4 * 1024 * 1024) // slab_in))
    # keep >= 2 grid tiles so the "parallel" axis feeds both v7x TensorCores
    if B >= 2:
        cap = min(cap, pl.cdiv(B, 2))
    return max(1, min(cap, max(B, 1)))


def eig_loss(f1, f2, eig: bool = True, block_b=None):
    """Pallas implementation of EigLoss.forward; returns a scalar f32."""
    assert f1.shape == f2.shape and f1.ndim == 3
    B, N, M = f1.shape
    itemsize = jnp.dtype(f1.dtype).itemsize

    # Generation-aware scoped-VMEM limit: 48 MiB on v7x (64 MiB physical),
    # 64 MiB on v5e/v6e (128 MiB physical).
    vmem_cap = _vmem_capacity_bytes()
    vmem_limit = max(32 * 1024 * 1024,
                     min(vmem_cap - 16 * 1024 * 1024, 64 * 1024 * 1024))

    if block_b is None:
        block_b = _choose_block_b(B, N, M, itemsize, vmem_limit)
    block_b = max(1, min(int(block_b), B))

    # Zero-pad the batch to a multiple of block_b (padded slabs contribute
    # exactly 0 to both the KL sum and |tr1 - tr2|, so results stay exact).
    num_tiles = pl.cdiv(B, block_b)
    b_pad = num_tiles * block_b
    if b_pad != B:
        pad = ((0, b_pad - B), (0, 0), (0, 0))
        f1p = jnp.pad(f1, pad)
        f2p = jnp.pad(f2, pad)
    else:
        f1p, f2p = f1, f2

    cost = pl.CostEstimate(
        flops=12 * b_pad * N * M,
        transcendentals=2 * b_pad * N * M + 4 * b_pad * M,
        bytes_accessed=2 * b_pad * N * M * itemsize + num_tiles * 8 * 128 * 4,
    )

    partials = pl.pallas_call(
        functools.partial(_eig_loss_kernel, eig=eig),
        out_shape=jax.ShapeDtypeStruct((num_tiles, 8, 128), jnp.float32),
        grid_spec=pltpu.PrefetchScalarGridSpec(
            num_scalar_prefetch=0,
            grid=(num_tiles,),
            in_specs=[
                pl.BlockSpec((block_b, N, M), lambda i: (i, 0, 0)),
                pl.BlockSpec((block_b, N, M), lambda i: (i, 0, 0)),
            ],
            out_specs=pl.BlockSpec((1, 8, 128), lambda i: (i, 0, 0)),
        ),
        compiler_params=pltpu.CompilerParams(
            dimension_semantics=("parallel",),
            vmem_limit_bytes=int(vmem_limit),
        ),
        cost_estimate=cost,
    )(f1p, f2p)

    # Tiny final reductions over num_tiles partials (plain JAX); divide by the
    # TRUE element / batch counts (padding contributes 0 to the sums).
    kl_total = jnp.sum(partials[:, 0, 0])
    loss2 = kl_total / jnp.float32(B * N * M)              # KLDivLoss 'mean'
    if eig:
        loss1 = jnp.sum(partials[:, 0, 1]) / jnp.float32(B)  # L1 'mean' on traces
        return 0.01 * loss1 + loss2
    return loss2


def _eig_loss_ref(f1, f2, eig: bool = True):
    """Pure-JAX reference mirroring the PyTorch module."""
    f1 = f1.astype(jnp.float32)
    f2 = f2.astype(jnp.float32)
    f1_sm = jax.nn.softmax(f1, axis=1)
    f2_sm = jax.nn.softmax(f2, axis=1)
    f1_lsm = jax.nn.log_softmax(f1, axis=1)
    f2_lsm = jax.nn.log_softmax(f2, axis=1)
    loss2 = jnp.mean(f2_sm * (f2_lsm - f1_lsm))
    if eig:
        tr1 = jnp.trace(f1_sm, axis1=-2, axis2=-1)
        tr2 = jnp.trace(f2_sm, axis1=-2, axis2=-1)
        loss1 = jnp.mean(jnp.abs(tr1 - tr2))
        return 0.01 * loss1 + loss2
    return loss2


if __name__ == "__main__":
    key = jax.random.PRNGKey(0)
    k1, k2, k3, k4, k5, k6 = jax.random.split(key, 6)

    # Case 1: small square feature maps (B=2 -> block_b=1, grid=(2,)).
    B, N = 2, 16
    f1 = jax.random.normal(k1, (B, N, N), dtype=jnp.float32)
    f2 = jax.random.normal(k2, (B, N, N), dtype=jnp.float32)

    loss = eig_loss(f1, f2, eig=True)
    jax.block_until_ready(loss)
    ref = _eig_loss_ref(f1, f2, eig=True)
    assert jnp.allclose(loss, ref, rtol=1e-4, atol=1e-6), (loss, ref)

    # eig=False path (KL only).
    loss_ne = eig_loss(f1, f2, eig=False)
    jax.block_until_ready(loss_ne)
    ref_ne = _eig_loss_ref(f1, f2, eig=False)
    assert jnp.allclose(loss_ne, ref_ne, rtol=1e-4, atol=1e-6), (loss_ne, ref_ne)

    # Case 2: odd batch -> exercises the zero-padding path (block_b=2, pad to 4).
    B2, N2 = 3, 32
    g1 = jax.random.normal(k3, (B2, N2, N2), dtype=jnp.float32)
    g2 = jax.random.normal(k4, (B2, N2, N2), dtype=jnp.float32)
    loss2_case = eig_loss(g1, g2, eig=True)
    jax.block_until_ready(loss2_case)
    ref2_case = _eig_loss_ref(g1, g2, eig=True)
    assert jnp.allclose(loss2_case, ref2_case, rtol=1e-4, atol=1e-6), (loss2_case, ref2_case)

    # Case 3: non-square feature maps (N != M) to exercise the diagonal mask.
    B3, N3, M3 = 2, 16, 24
    h1 = jax.random.normal(k5, (B3, N3, M3), dtype=jnp.float32)
    h2 = jax.random.normal(k6, (B3, N3, M3), dtype=jnp.float32)
    loss3_case = eig_loss(h1, h2, eig=True)
    jax.block_until_ready(loss3_case)
    ref3_case = _eig_loss_ref(h1, h2, eig=True)
    assert jnp.allclose(loss3_case, ref3_case, rtol=1e-4, atol=1e-6), (loss3_case, ref3_case)

    print("KERNEL_OK")
</pallas_src>

<mosaic_0001>
module attributes {stable_mosaic.version = 11 : i64} {
  func.func @_eig_loss_kernel(%arg0: i32, %arg1: memref<1x16x16xf32, #tpu.memory_space<vmem>>, %arg2: memref<1x16x16xf32, #tpu.memory_space<vmem>>, %arg3: memref<1x8x128xf32, #tpu.memory_space<vmem>>) attributes {dimension_semantics = [#tpu.dimension_semantics<parallel>], iteration_bounds = array<i64: 2>, scalar_prefetch = 0 : i64, scratch_operands = 0 : i64, tpu.core_type = #tpu.core_type<tc>, window_params = [{transform_indices = @transform_0, window_bounds = array<i64: 1, 16, 16>}, {transform_indices = @transform_1, window_bounds = array<i64: 1, 16, 16>}, {transform_indices = @transform_2, window_bounds = array<i64: 1, 8, 128>}]} {
    %c0 = arith.constant 0 : index
    %c0_0 = arith.constant 0 : index
    %c0_1 = arith.constant 0 : index
    %0 = vector.load %arg1[%c0, %c0_0, %c0_1] : memref<1x16x16xf32, #tpu.memory_space<vmem>>, vector<1x16x16xf32>
    %c0_2 = arith.constant 0 : index
    %c0_3 = arith.constant 0 : index
    %c0_4 = arith.constant 0 : index
    %1 = vector.load %arg2[%c0_2, %c0_3, %c0_4] : memref<1x16x16xf32, #tpu.memory_space<vmem>>, vector<1x16x16xf32>
    %cst = arith.constant dense<0xFF800000> : vector<1x16xf32>
    %2 = vector.multi_reduction <maximumf>, %0, %cst [1] : vector<1x16x16xf32> to vector<1x16xf32>
    %3 = vector.shape_cast %2 : vector<1x16xf32> to vector<1x1x16xf32>
    %cst_5 = arith.constant dense<0xFF800000> : vector<1x16xf32>
    %4 = vector.multi_reduction <maximumf>, %1, %cst_5 [1] : vector<1x16x16xf32> to vector<1x16xf32>
    %5 = vector.shape_cast %4 : vector<1x16xf32> to vector<1x1x16xf32>
    %6 = vector.broadcast %3 : vector<1x1x16xf32> to vector<1x16x16xf32>
    %7 = arith.subf %0, %6 : vector<1x16x16xf32>
    %8 = math.exp %7 : vector<1x16x16xf32>
    %9 = vector.broadcast %5 : vector<1x1x16xf32> to vector<1x16x16xf32>
    %10 = arith.subf %1, %9 : vector<1x16x16xf32>
    %11 = math.exp %10 : vector<1x16x16xf32>
    %cst_6 = arith.constant dense<0.000000e+00> : vector<1x16xf32>
    %12 = vector.multi_reduction <add>, %8, %cst_6 [1] : vector<1x16x16xf32> to vector<1x16xf32>
    %13 = vector.shape_cast %12 : vector<1x16xf32> to vector<1x1x16xf32>
    %cst_7 = arith.constant dense<0.000000e+00> : vector<1x16xf32>
    %14 = vector.multi_reduction <add>, %11, %cst_7 [1] : vector<1x16x16xf32> to vector<1x16xf32>
    %15 = vector.shape_cast %14 : vector<1x16xf32> to vector<1x1x16xf32>
    %16 = tpu.reciprocal %15 : vector<1x1x16xf32> -> vector<1x1x16xf32>
    %17 = arith.subf %3, %5 : vector<1x1x16xf32>
    %18 = math.log %13 : vector<1x1x16xf32>
    %19 = math.log %15 : vector<1x1x16xf32>
    %20 = arith.subf %18, %19 : vector<1x1x16xf32>
    %21 = arith.addf %17, %20 : vector<1x1x16xf32>
    %22 = vector.broadcast %16 : vector<1x1x16xf32> to vector<1x16x16xf32>
    %23 = arith.mulf %11, %22 : vector<1x16x16xf32>
    %24 = arith.subf %1, %0 : vector<1x16x16xf32>
    %25 = vector.broadcast %21 : vector<1x1x16xf32> to vector<1x16x16xf32>
    %26 = arith.addf %24, %25 : vector<1x16x16xf32>
    %27 = arith.mulf %23, %26 : vector<1x16x16xf32>
    %28 = vector.shape_cast %27 : vector<1x16x16xf32> to vector<1x1x16x16xf32>
    %cst_8 = arith.constant dense<0.000000e+00> : vector<1xf32>
    %29 = vector.multi_reduction <add>, %28, %cst_8 [1, 2, 3] : vector<1x1x16x16xf32> to vector<1xf32>
    %30 = vector.shape_cast %29 : vector<1xf32> to vector<1x1x1x1xf32>
    %31 = vector.extract %30[0, 0, 0, 0] : f32 from vector<1x1x1x1xf32>
    %32 = tpu.iota {dimensions = array<i32: 0>} : vector<16x16xi32>
    %33 = tpu.iota {dimensions = array<i32: 1>} : vector<16x16xi32>
    %34 = arith.cmpi eq, %32, %33 : vector<16x16xi32>
    %35 = arith.extui %34 : vector<16x16xi1> to vector<16x16xi32>
    %36 = arith.sitofp %35 : vector<16x16xi32> to vector<16x16xf32>
    %37 = vector.shape_cast %36 : vector<16x16xf32> to vector<1x16x16xf32>
    %38 = tpu.reciprocal %13 : vector<1x1x16xf32> -> vector<1x1x16xf32>
    %39 = arith.mulf %8, %37 : vector<1x16x16xf32>
    %cst_9 = arith.constant dense<0.000000e+00> : vector<1x16xf32>
    %40 = vector.multi_reduction <add>, %39, %cst_9 [1] : vector<1x16x16xf32> to vector<1x16xf32>
    %41 = vector.shape_cast %40 : vector<1x16xf32> to vector<1x1x16xf32>
    %42 = arith.mulf %11, %37 : vector<1x16x16xf32>
    %cst_10 = arith.constant dense<0.000000e+00> : vector<1x16xf32>
    %43 = vector.multi_reduction <add>, %42, %cst_10 [1] : vector<1x16x16xf32> to vector<1x16xf32>
    %44 = vector.shape_cast %43 : vector<1x16xf32> to vector<1x1x16xf32>
    %45 = arith.mulf %41, %38 : vector<1x1x16xf32>
    %46 = arith.mulf %44, %16 : vector<1x1x16xf32>
    %47 = arith.subf %45, %46 : vector<1x1x16xf32>
    %cst_11 = arith.constant dense<0.000000e+00> : vector<1xf32>
    %48 = vector.multi_reduction <add>, %47, %cst_11 [1, 2] : vector<1x1x16xf32> to vector<1xf32>
    %49 = math.absf %48 : vector<1xf32>
    %50 = vector.shape_cast %49 : vector<1xf32> to vector<1x1xf32>
    %cst_12 = arith.constant dense<0.000000e+00> : vector<1xf32>
    %51 = vector.multi_reduction <add>, %50, %cst_12 [1] : vector<1x1xf32> to vector<1xf32>
    %52 = vector.shape_cast %51 : vector<1xf32> to vector<1x1xf32>
    %53 = vector.extract %52[0, 0] : f32 from vector<1x1xf32>
    %54 = tpu.iota {dimensions = array<i32: 1>} : vector<1x8x128xi32>
    %55 = tpu.iota {dimensions = array<i32: 2>} : vector<1x8x128xi32>
    %c0_i32 = arith.constant 0 : i32
    %56 = vector.broadcast %c0_i32 : i32 to vector<1x8x128xi32>
    %57 = arith.cmpi eq, %54, %56 : vector<1x8x128xi32>
    %c0_i32_13 = arith.constant 0 : i32
    %58 = vector.broadcast %c0_i32_13 : i32 to vector<1x8x128xi32>
    %59 = arith.cmpi eq, %55, %58 : vector<1x8x128xi32>
    %60 = arith.andi %57, %59 : vector<1x8x128xi1>
    %cst_14 = arith.constant 0.000000e+00 : f32
    %61 = vector.broadcast %31 : f32 to vector<1x8x128xf32>
    %62 = vector.broadcast %cst_14 : f32 to vector<1x8x128xf32>
    %63 = arith.select %60, %61, %62 : vector<1x8x128xi1>, vector<1x8x128xf32>
    %c0_i32_15 = arith.constant 0 : i32
    %64 = vector.broadcast %c0_i32_15 : i32 to vector<1x8x128xi32>
    %65 = arith.cmpi eq, %54, %64 : vector<1x8x128xi32>
    %c1_i32 = arith.constant 1 : i32
    %66 = vector.broadcast %c1_i32 : i32 to vector<1x8x128xi32>
    %67 = arith.cmpi eq, %55, %66 : vector<1x8x128xi32>
    %68 = arith.andi %65, %67 : vector<1x8x128xi1>
    %69 = vector.broadcast %53 : f32 to vector<1x8x128xf32>
    %70 = arith.select %68, %69, %63 : vector<1x8x128xi1>, vector<1x8x128xf32>
    %c0_16 = arith.constant 0 : index
    %c0_17 = arith.constant 0 : index
    %c0_18 = arith.constant 0 : index
    %71 = vector.load %arg3[%c0_16, %c0_17, %c0_18] : memref<1x8x128xf32, #tpu.memory_space<vmem>>, vector<1x8x128xf32>
    tpu.vector_store %arg3[%c0_16, %c0_17, %c0_18], %70 {strides = array<i32>} : memref<1x8x128xf32, #tpu.memory_space<vmem>>, vector<1x8x128xf32>,
    return
  }
  func.func @transform_0(%arg0: i32) -> (i32, i32, i32) {
    %c0_i32 = arith.constant 0 : i32
    %c0_i32_0 = arith.constant 0 : i32
    %c0_i32_1 = arith.constant 0 : i32
    return %arg0, %c0_i32, %c0_i32_0 : i32, i32, i32
  }
  func.func @transform_1(%arg0: i32) -> (i32, i32, i32) {
    %c0_i32 = arith.constant 0 : i32
    %c0_i32_0 = arith.constant 0 : i32
    %c0_i32_1 = arith.constant 0 : i32
    return %arg0, %c0_i32, %c0_i32_0 : i32, i32, i32
  }
  func.func @transform_2(%arg0: i32) -> (i32, i32, i32) {
    %c0_i32 = arith.constant 0 : i32
    %c0_i32_0 = arith.constant 0 : i32
    %c0_i32_1 = arith.constant 0 : i32
    return %arg0, %c0_i32, %c0_i32_0 : i32, i32, i32
  }
}

</mosaic_0001>

<llo_original>
// kernel: tpu_custom_call.1
$region0: #{tpu_custom_call.1}
  #allocation0 [shape = 'u32[]', space=smem, size = 0x4, offset = 0x4, fixed_abs, tag = 'smem constant byte address 0x4 - core index']
  #allocation1 [shape = 'u32[144,128]{1,0:T(1,128)}', space=vmem, size = 0x12000, scoped, tag = 'internal scratch']
  %s0 = inlined_call_operand.hbm [shape: f32[2,16,16], index: 0, kind: input, shape index: {}]
  %s1 = inlined_call_operand.hbm [shape: f32[2,16,16], index: 1, kind: input, shape index: {}]
  %s2 = inlined_call_operand.hbm [shape: f32[2,8,128], index: 2, kind: output, shape index: {}]
  %s3 = sld [smem:[#allocation0]]
  $region49: #{tpu_custom_call.1} parent=0
    _
  %s5 = ssub.s32 1, %s3
  %s6 = scalar_select 0, %s5, %s3
  $region1: #{tpu_custom_call.1} parent=0
    #allocation2 [shape = 'u8[16384]{0}', space=vmem, size = 0x4000, scoped, tag = 'input window, operand 0']
    #allocation3 [shape = 's32[2]{0}', space=sflag, size = 0x8, scoped, tag = 'scoped memory for tpu_custom_call.1']
    #allocation4 [shape = 's32[2]{0}', space=sflag, size = 0x8, scoped, tag = 'scoped memory for tpu_custom_call.1']
    #allocation5 [shape = 'u8[16384]{0}', space=vmem, size = 0x4000, scoped, tag = 'input window, operand 1']
    #allocation6 [shape = 's32[2]{0}', space=sflag, size = 0x8, scoped, tag = 'scoped memory for tpu_custom_call.1']
    #allocation7 [shape = 'u8[8192]{0}', space=vmem, size = 0x2000, scoped, tag = 'output window, operand 0']
    %7 = vsyncpa [#allocation3], 0
    %s8 = scalar_lea.sflag [#allocation3], 1
    %9 = vsyncpa %s8, 0
    %10 = vsyncpa [#allocation6], 0
    %s11 = scalar_lea.sflag [#allocation6], 1
    %12 = vsyncpa %s11, 0
    %13 = vsyncpa [#allocation4], 0
    %s14 = scalar_lea.sflag [#allocation4], 1
    %15 = vsyncpa %s14, 0
    loop: start=0, step=1, limit=4
    $region2: #{tpu_custom_call.1} parent=1 // loop_pre_header
      _
    $region3: #{tpu_custom_call.1} parent=1 // loop_header
      %s17 = sphi 0, %s21
      %p18 = scmp.ge.s32.totalorder %s17, 4
      %s27 = sphi 0, %s29
      %s30 = sphi 0, %s27
      %s31 = sphi 0, %s30
      %s47 = sphi 0, %s31
      %s53 = sphi 0, %s55
      %s56 = sphi 0, %s53
      %s57 = sphi 0, %s56
      %s73 = sphi 0, %s57
      %s79 = sphi 0, %s81
      %s82 = sphi 0, %s79
      %s83 = sphi 0, %s82
      %s99 = sphi 0, %s83
    $region4: #{tpu_custom_call.1} parent=1 // loop_header_branch
      %20 = sbr.rel (%p18) target = $region8
    $region5: #{tpu_custom_call.1} parent=1 // loop_body
      %s22 = ssub.s32 %s17, 1
      %s23 = ssub.s32 %s17, 2
      %s24 = sadd.s32 %s17, 1
      %s25 = ssub.s32 %s17, %s24
      %p26 = scmp.eq.s32.totalorder %s25, 0
      %s28 = sadd.s32 %s27, 1
      %s29 = scalar_select %p26, %s27, %s28
      %p32 = pneg %p26
      %p33 = scmp.eq.s32.totalorder %s17, 1
      %p34 = por %p32, %p33
      %p35 = scmp.ne.s32.totalorder %s27, %s30
      %p36 = scmp.eq.s32.totalorder %s17, 0
      %p37 = por %p35, %p36
      %p38 = scmp.ne.s32.totalorder %s27, %s30
      %p39 = scmp.eq.s32.totalorder %s22, 1
      %p40 = por %p38, %p39
      %p41 = scmp.ne.s32.totalorder %s30, %s31
      %p42 = scmp.eq.s32.totalorder %s22, 0
      %p43 = por %p41, %p42
      %p44 = scmp.ne.s32.totalorder %s30, %s31
      %p45 = scmp.eq.s32.totalorder %s23, 1
      %p46 = por %p44, %p45
      %p48 = scmp.ne.s32.totalorder %s31, %s47
      %p49 = scmp.eq.s32.totalorder %s23, 0
      %p50 = por %p48, %p49
      %s51 = ssub.s32 %s17, %s24
      %p52 = scmp.eq.s32.totalorder %s51, 0
      %s54 = sadd.s32 %s53, 1
      %s55 = scalar_select %p52, %s53, %s54
      %p58 = pneg %p52
      %p59 = scmp.eq.s32.totalorder %s17, 1
      %p60 = por %p58, %p59
      %p61 = scmp.ne.s32.totalorder %s53, %s56
      %p62 = scmp.eq.s32.totalorder %s17, 0
      %p63 = por %p61, %p62
      %p64 = scmp.ne.s32.totalorder %s53, %s56
      %p65 = scmp.eq.s32.totalorder %s22, 1
      %p66 = por %p64, %p65
      %p67 = scmp.ne.s32.totalorder %s56, %s57
      %p68 = scmp.eq.s32.totalorder %s22, 0
      %p69 = por %p67, %p68
      %p70 = scmp.ne.s32.totalorder %s56, %s57
      %p71 = scmp.eq.s32.totalorder %s23, 1
      %p72 = por %p70, %p71
      %p74 = scmp.ne.s32.totalorder %s57, %s73
      %p75 = scmp.eq.s32.totalorder %s23, 0
      %p76 = por %p74, %p75
      %s77 = ssub.s32 %s17, %s24
      %p78 = scmp.eq.s32.totalorder %s77, 0
      %s80 = sadd.s32 %s79, 1
      %s81 = scalar_select %p78, %s79, %s80
      %p84 = pneg %p78
      %p85 = scmp.eq.s32.totalorder %s17, 1
      %p86 = por %p84, %p85
      %p87 = scmp.ne.s32.totalorder %s79, %s82
      %p88 = scmp.eq.s32.totalorder %s17, 0
      %p89 = por %p87, %p88
      %p90 = scmp.ne.s32.totalorder %s79, %s82
      %p91 = scmp.eq.s32.totalorder %s22, 1
      %p92 = por %p90, %p91
      %p93 = scmp.ne.s32.totalorder %s82, %s83
      %p94 = scmp.eq.s32.totalorder %s22, 0
      %p95 = por %p93, %p94
      %p96 = scmp.ne.s32.totalorder %s82, %s83
      %p97 = scmp.eq.s32.totalorder %s23, 1
      %p98 = por %p96, %p97
      %p100 = scmp.ne.s32.totalorder %s83, %s99
      %p101 = scmp.eq.s32.totalorder %s23, 0
      %p102 = por %p100, %p101
      %p103 = scmp.le.s32.totalorder 1, %s17
      %p104 = scmp.lt.s32.totalorder %s17, 3
      %p105 = pnand %p103, %p104
      %p106 = pneg %p105
      // Predicated region
      $region9: #{tpu_custom_call.1} parent=5 // pred_check
        _
      $region10: #{tpu_custom_call.1} parent=5 // pred_check_branch
        %108 = sbr.rel (%p105) target = $region12
      $region11: #{tpu_custom_call.1} parent=5 // pred_region
        %s109 = ssub.s32 %s17, 1
      $region12: #{tpu_custom_call.1} parent=5 // pred_fallthru
        _
      %p110 = scmp.lt.s32.totalorder %s17, 2
      // Predicated region
      $region13: #{tpu_custom_call.1} parent=5 // pred_check
        %p111 = pneg %p110
      $region14: #{tpu_custom_call.1} parent=5 // pred_check_branch
        %113 = sbr.rel (%p111) target = $region16
      $region15: #{tpu_custom_call.1} parent=5 // pred_region
        // Predicated region
        $region17: #{tpu_custom_call.1} parent=15 // pred_check
          %p114 = pneg %p37
        $region18: #{tpu_custom_call.1} parent=15 // pred_check_branch
          %116 = sbr.rel (%p114) target = $region20
        $region19: #{tpu_custom_call.1} parent=15 // pred_region
          %s117 = sand.u32 %s27, 1
          %s118 = scalar_lea.sflag [#allocation3], %s117
          %s119 = sand.u32 %s27, 1
          %s120 = smul.addr %s119, 16
          %s121 = scalar_lea.vmem [#allocation2], %s120
          %s123 = ssub.s32 256, 256
          %124 = vsyncadd %s118, %s123
          %s125 = smul.addr %s17, 2
          %s126 = smul.addr %s125, 128
          %s127 = scalar_lea.hbm %s0, %s126
          %s128 = sshll.u32 %s121, 4
          %s129 = int_to_ptr.vmem [resolvable:$true] %s128
          %134 = dma.hbm_to_vmem [thread:$0]  %s127, 256, %s129, %s118, 128, 128, 8
        $region20: #{tpu_custom_call.1} parent=15 // pred_fallthru
          _
        // Predicated region
        $region21: #{tpu_custom_call.1} parent=15 // pred_check
          %p135 = pneg %p63
        $region22: #{tpu_custom_call.1} parent=15 // pred_check_branch
          %137 = sbr.rel (%p135) target = $region24
        $region23: #{tpu_custom_call.1} parent=15 // pred_region
          %s138 = sand.u32 %s53, 1
          %s139 = scalar_lea.sflag [#allocation6], %s138
          %s140 = sand.u32 %s53, 1
          %s141 = smul.addr %s140, 16
          %s142 = scalar_lea.vmem [#allocation5], %s141
          %s144 = ssub.s32 256, 256
          %145 = vsyncadd %s139, %s144
          %s146 = smul.addr %s17, 2
          %s147 = smul.addr %s146, 128
          %s148 = scalar_lea.hbm %s1, %s147
          %s149 = sshll.u32 %s142, 4
          %s150 = int_to_ptr.vmem [resolvable:$true] %s149
          %155 = dma.hbm_to_vmem [thread:$0]  %s148, 256, %s150, %s139, 128, 128, 8
        $region24: #{tpu_custom_call.1} parent=15 // pred_fallthru
          _
      $region16: #{tpu_custom_call.1} parent=5 // pred_fallthru
        _
      %p156 = scmp.le.s32.totalorder 1, %s17
      %p157 = scmp.lt.s32.totalorder %s17, 3
      %p158 = pnand %p156, %p157
      %p159 = pneg %p158
      // Predicated region
      $region25: #{tpu_custom_call.1} parent=5 // pred_check
        _
      $region26: #{tpu_custom_call.1} parent=5 // pred_check_branch
        %161 = sbr.rel (%p158) target = $region28
      $region27: #{tpu_custom_call.1} parent=5 // pred_region
        %s162 = ssub.s32 %s17, 1
        %s163 = sand.u32 %s30, 1
        %s164 = scalar_lea.sflag [#allocation3], %s163
        %s165 = sand.u32 %s30, 1
        %s166 = smul.addr %s165, 16
        %s167 = scalar_lea.vmem [#allocation2], %s166
        // Predicated region
        $region29: #{tpu_custom_call.1} parent=27 // pred_check
          %p168 = pneg %p43
        $region30: #{tpu_custom_call.1} parent=27 // pred_check_branch
          %170 = sbr.rel (%p168) target = $region32
        $region31: #{tpu_custom_call.1} parent=27 // pred_region
          %171 = dma.done %s164, 256
        $region32: #{tpu_custom_call.1} parent=27 // pred_fallthru
          _
        %s172 = sand.u32 %s56, 1
        %s173 = scalar_lea.sflag [#allocation6], %s172
        %s174 = sand.u32 %s56, 1
        %s175 = smul.addr %s174, 16
        %s176 = scalar_lea.vmem [#allocation5], %s175
        // Predicated region
        $region33: #{tpu_custom_call.1} parent=27 // pred_check
          %p177 = pneg %p69
        $region34: #{tpu_custom_call.1} parent=27 // pred_check_branch
          %179 = sbr.rel (%p177) target = $region36
        $region35: #{tpu_custom_call.1} parent=27 // pred_region
          %180 = dma.done %s173, 256
        $region36: #{tpu_custom_call.1} parent=27 // pred_fallthru
          _
        %s181 = sand.u32 %s30, 1
        %s182 = scalar_lea.sflag [#allocation3], %s181
        %s183 = sand.u32 %s30, 1
        %s184 = smul.addr %s183, 16
        %s185 = scalar_lea.vmem [#allocation2], %s184
        %p186 = pneg %p43
        %p187 = pneg %p40
        %s188 = sand.u32 %s56, 1
        %s189 = scalar_lea.sflag [#allocation6], %s188
        %s190 = sand.u32 %s56, 1
        %s191 = smul.addr %s190, 16
        %s192 = scalar_lea.vmem [#allocation5], %s191
        %p193 = pneg %p69
        %p194 = pneg %p66
        %p195 = pneg %p95
        %p196 = pneg %p92
        %s197 = sand.u32 %s82, 1
        %s198 = scalar_lea.sflag [#allocation4], %s197
        %s199 = sand.u32 %s82, 1
        %s200 = smul.addr %s199, 8
        %s201 = scalar_lea.vmem [#allocation7], %s200
        %v202 = vld [vmem:[%s167] sm:$0xff]
        %v203 = vld [vmem:[%s167 + $0x8] sm:$0xff]
        %v204 = vld [vmem:[%s176] sm:$0xff]
        %v205 = vld [vmem:[%s176 + $0x8] sm:$0xff]
        %vm206 = vcmask 130048
        %v207 = vsel %vm206, %v202, -inf
        %v208 = vsel %vm206, %v203, -inf
        %v209 = vmax.f32 %v207, %v208
        %v210 = vrot.slane %v209, 4
        %v211 = vmax.f32 %v209, %v210
        %v212 = vrot.slane %v211, 2
        %v213 = vmax.f32 %v211, %v212
        %v214 = vrot.slane %v213, 1
        %v215 = vmax.f32 %v213, %v214
        %v216 = vsel %vm206, %v204, -inf
        %v217 = vsel %vm206, %v205, -inf
        %v218 = vmax.f32 %v216, %v217
        %v219 = vrot.slane %v218, 4
        %v220 = vmax.f32 %v218, %v219
        %v221 = vrot.slane %v220, 2
        %v222 = vmax.f32 %v220, %v221
        %v223 = vrot.slane %v222, 1
        %v224 = vmax.f32 %v222, %v223
        %v225 = vsub.f32 %v202, %v215
        %v226 = vsub.f32 %v203, %v215
        %v227 = vmul.f32 %v225, 1.442695
        %v228 = vpow.pop %v227
        %v229 = vmul.f32 %v226, 1.442695
        %v230 = vpow.pop %v229
        %v231 = vsub.f32 %v204, %v224
        %v232 = vsub.f32 %v205, %v224
        %v233 = vmul.f32 %v231, 1.442695
        %v234 = vpow.pop %v233
        %v235 = vmul.f32 %v232, 1.442695
        %v236 = vpow.pop %v235
        %v237 = vsel %vm206, %v228, 0.0
        %v238 = vsel %vm206, %v230, 0.0
        %v239 = vadd.f32 %v237, %v238
        %v240 = vrot.slane %v239, 4
        %v241 = vadd.f32 %v239, %v240
        %v242 = vrot.slane %v241, 2
        %v243 = vadd.f32 %v241, %v242
        %v244 = vrot.slane %v243, 1
        %v245 = vadd.f32 %v243, %v244
        %v246 = vsel %vm206, %v234, 0.0
        %v247 = vsel %vm206, %v236, 0.0
        %v248 = vadd.f32 %v246, %v247
        %v249 = vrot.slane %v248, 4
        %v250 = vadd.f32 %v248, %v249
        %v251 = vrot.slane %v250, 2
        %v252 = vadd.f32 %v250, %v251
        %v253 = vrot.slane %v252, 1
        %v254 = vadd.f32 %v252, %v253
        %v255 = vrcp.pop %v254
        %v256 = vsub.f32 %v215, %v224
        %v257 = vlog2.pop %v245
        %v258 = vmul.f32 %v257, 0.6931472
        %v259 = vlog2.pop %v254
        %v260 = vmul.f32 %v259, 0.6931472
        %v261 = vsub.f32 %v258, %v260
        %v262 = vadd.f32 %v256, %v261
        %v263 = vmul.f32 %v234, %v255
        %v264 = vmul.f32 %v236, %v255
        %v265 = vsub.f32 %v204, %v202
        %v266 = vsub.f32 %v205, %v203
        %v267 = vadd.f32 %v265, %v262
        %v268 = vadd.f32 %v266, %v262
        %v269 = vmul.f32 %v263, %v267
        %v270 = vmul.f32 %v264, %v268
        %v271 = vsel %vm206, %v269, 0.0
        %v272 = vsel %vm206, %v270, 0.0
        %v273 = vadd.f32 %v271, %v272
        %274 = vadd.xlane.f32.xlu0 %v273
        %v275 = vpop.xlane.xlu0 %274
        %v276 = vrot.slane %v275, 4
        %v277 = vadd.f32 %v275, %v276
        %v278 = vrot.slane %v277, 2
        %v279 = vadd.f32 %v277, %v278
        %v280 = vrot.slane %v279, 1
        %v281 = vadd.f32 %v279, %v280
        %s282 = vtos %v281
        %v283 = vlaneseq
        %v284 = vshrl.u32 %v283, 7
        %v285 = vadd.s32 %v284, 8
        %v286 = vlaneseq
        %v287 = vand.u32 %v286, 127
        %vm288 = vcmp.eq.s32.totalorder %v284, %v287
        %vm289 = vcmp.eq.s32.totalorder %v285, %v287
        %v290 = vsel %vm288, 1, 0
        %v291 = vsel %vm289, 1, 0
        %v292 = vcvt.s32.f32 %v290
        %v293 = vcvt.s32.f32 %v291
        %v294 = vrcp.pop %v245
        %v295 = vmul.f32 %v228, %v292
        %v296 = vmul.f32 %v230, %v293
        %v297 = vsel %vm206, %v295, 0.0
        %v298 = vsel %vm206, %v296, 0.0
        %v299 = vadd.f32 %v297, %v298
        %v300 = vrot.slane %v299, 4
        %v301 = vadd.f32 %v299, %v300
        %v302 = vrot.slane %v301, 2
        %v303 = vadd.f32 %v301, %v302
        %v304 = vrot.slane %v303, 1
        %v305 = vadd.f32 %v303, %v304
        %v306 = vmul.f32 %v234, %v292
        %v307 = vmul.f32 %v236, %v293
        %v308 = vsel %vm206, %v306, 0.0
        %v309 = vsel %vm206, %v307, 0.0
        %v310 = vadd.f32 %v308, %v309
        %v311 = vrot.slane %v310, 4
        %v312 = vadd.f32 %v310, %v311
        %v313 = vrot.slane %v312, 2
        %v314 = vadd.f32 %v312, %v313
        %v315 = vrot.slane %v314, 1
        %v316 = vadd.f32 %v314, %v315
        %v317 = vmul.f32 %v305, %v294
        %v318 = vmul.f32 %v316, %v255
        %v319 = vsub.f32 %v317, %v318
        %vm320 = vcmask 122880
        %v321 = vsel %vm320, %v319, 0.0
        %322 = vadd.xlane.f32.xlu0 %v321
        %v323 = vpop.xlane.xlu0 %322
        %v324 = vrot.slane %v323, 4
        %v325 = vadd.f32 %v323, %v324
        %v326 = vrot.slane %v325, 2
        %v327 = vadd.f32 %v325, %v326
        %v328 = vrot.slane %v327, 1
        %v329 = vadd.f32 %v327, %v328
        %v330 = vand.u32 2147483647, %v329
        %v331 = vadd.f32 %v330, 0.0
        %s332 = vtos %v331
        %vm333 = vcmp.eq.s32.totalorder %v284, 0
        %vm334 = vcmp.eq.s32.totalorder %v287, 0
        %vm335 = vmand %vm333, %vm334
        %v336 = vstv %s282
        %v337 = vsel %vm335, %v336, 0.0
        %vm338 = vcmp.eq.s32.totalorder %v287, 1
        %vm339 = vmand %vm333, %vm338
        %v340 = vstv %s332
        %v341 = vsel %vm339, %v340, %v337
        %342 = vst [vmem:[%s201] sm:$0xff] %v341
        %s343 = sand.u32 %s82, 1
        %s344 = scalar_lea.sflag [#allocation4], %s343
        %s345 = sand.u32 %s82, 1
        %s346 = smul.addr %s345, 8
        %s347 = scalar_lea.vmem [#allocation7], %s346
        // Predicated region
        $region37: #{tpu_custom_call.1} parent=27 // pred_check
          %p348 = pneg %p92
        $region38: #{tpu_custom_call.1} parent=27 // pred_check_branch
          %350 = sbr.rel (%p348) target = $region40
        $region39: #{tpu_custom_call.1} parent=27 // pred_region
          %s352 = ssub.s32 128, 128
          %353 = vsyncadd %s344, %s352
          %s354 = smul.addr %s22, 128
          %s355 = scalar_lea.hbm %s2, %s354
          %s357 = sshll.u32 %s347, 4
          %s358 = int_to_ptr.vmem [resolvable:$true] %s357
          %360 = dma.vmem_to_hbm [thread:$0]  %s358, 128, %s355, %s344
        $region40: #{tpu_custom_call.1} parent=27 // pred_fallthru
          _
      $region28: #{tpu_custom_call.1} parent=5 // pred_fallthru
        _
      %p361 = scmp.le.s32.totalorder 2, %s17
      // Predicated region
      $region41: #{tpu_custom_call.1} parent=5 // pred_check
        %p362 = pneg %p361
      $region42: #{tpu_custom_call.1} parent=5 // pred_check_branch
        %364 = sbr.rel (%p362) target = $region44
      $region43: #{tpu_custom_call.1} parent=5 // pred_region
        %s365 = ssub.s32 %s17, 2
        // Predicated region
        $region45: #{tpu_custom_call.1} parent=43 // pred_check
          %p366 = pneg %p98
        $region46: #{tpu_custom_call.1} parent=43 // pred_check_branch
          %368 = sbr.rel (%p366) target = $region48
        $region47: #{tpu_custom_call.1} parent=43 // pred_region
          %s369 = sand.u32 %s83, 1
          %s370 = scalar_lea.sflag [#allocation4], %s369
          %s371 = sand.u32 %s83, 1
          %s372 = smul.addr %s371, 8
          %s373 = scalar_lea.vmem [#allocation7], %s372
          %374 = dma.done %s370, 128
        $region48: #{tpu_custom_call.1} parent=43 // pred_fallthru
          _
      $region44: #{tpu_custom_call.1} parent=5 // pred_fallthru
        _
    $region6: #{tpu_custom_call.1} parent=1 // loop_footer
      %s21 = sadd.s32 1, %s17
    $region7: #{tpu_custom_call.1} parent=1 // loop_footer_branch
      %16 = sbr.rel target = $region3
    $region8: #{tpu_custom_call.1} parent=1 // loop_exit
      _
    %375 = vsyncpa [#allocation3], 1
    %s376 = scalar_lea.sflag [#allocation3], 1
    %377 = vsyncpa %s376, 1
    %378 = vsyncpa [#allocation6], 1
    %s379 = scalar_lea.sflag [#allocation6], 1
    %380 = vsyncpa %s379, 1
    %381 = vsyncpa [#allocation4], 1
    %s382 = scalar_lea.sflag [#allocation4], 1
    %383 = vsyncpa %s382, 1

</llo_original>
